<compile_context>
chip_gen: v5e
topology: v5e:2x2
jax: 0.10.0
libtpu: 0.0.40
codegen_flags: <defaults>
</compile_context>

<pallas_src>
import functools
import math

import jax
import jax.numpy as jnp
from jax import lax
from jax.experimental import pallas as pl
from jax.experimental.pallas import tpu as pltpu


def _mlp_kernel(x_ref,
                w1_ref, b1_ref,
                w2_ref, b2_ref,
                w3_ref, b3_ref,
                w4_ref, b4_ref,
                w5_ref, b5_ref,
                o_ref,
                *, sub_b, n_sub):
    """One grid step: rows [i*tile_b, (i+1)*tile_b) of x  ->  columns of y^T.

    Compute is feature-major: activations are (features, rows) so the batch
    dimension sits on the 128-lane axis and every VPU op / store is lane-dense.
    Weights stay in the PyTorch (out_features, in_features) layout.
    """
    f32 = jnp.float32

    # Load weights/biases once per grid step (tiny, VMEM resident).
    w1 = w1_ref[...]; b1 = b1_ref[...]
    w2 = w2_ref[...]; b2 = b2_ref[...]
    w3 = w3_ref[...]; b3 = b3_ref[...]
    w4 = w4_ref[...]; b4 = b4_ref[...]
    w5 = w5_ref[...]; b5 = b5_ref[...]

    # (out, in) x (rows, in)^T -> (out, rows): folds the x transpose into the MXU op.
    dn_tt = (((1,), (1,)), ((), ()))
    # (out, in) x (in, rows)   -> (out, rows): standard feature-major layer.
    dn_ff = (((1,), (0,)), ((), ()))

    # Static sub-chunk loop: each sub-chunk's activations stay in vregs across
    # all five layers (no per-layer VMEM round trip). Offsets are Python ints.
    for c in range(n_sub):
        xs = x_ref[pl.ds(c * sub_b, sub_b), :]                       # (sub_b, 9)

        # fc1 + relu (f32 MXU accumulation).
        h = lax.dot_general(w1, xs, dn_tt, preferred_element_type=f32) + b1
        h = jnp.maximum(h, 0.0)                                      # (H, sub_b) f32

        # fc2 / fc3 / fc4: residual + relu; elementwise chain stays f32, the dot
        # operand is cast to the weight dtype (no-op for f32, bf16 MXU path for bf16).
        for w, b in ((w2, b2), (w3, b3), (w4, b4)):
            z = lax.dot_general(w, h.astype(w.dtype), dn_ff,
                                preferred_element_type=f32) + b
            h = jnp.maximum(h + z, 0.0)

        # fc5 (no activation) — lane-dense (2, sub_b) store.
        y = lax.dot_general(w5, h.astype(w5.dtype), dn_ff,
                            preferred_element_type=f32) + b5
        o_ref[:, pl.ds(c * sub_b, sub_b)] = y.astype(o_ref.dtype)


def _default_compute_dtype():
    """bf16 on v6e / v7x (bf16 VPU + MXU, halves x HBM read); f32 otherwise."""
    try:
        kind = jax.devices()[0].device_kind.lower()
    except Exception:
        return jnp.float32
    if ("v6" in kind) or ("v7" in kind) or ("7x" in kind):
        return jnp.bfloat16
    return jnp.float32


def mlp_forward(x, params, *, tile_b=2048, sub_b=256, compute_dtype=None):
    """Run the MLP forward pass as a single Pallas kernel.

    x:      (B, 9) float32
    params: list of 5 (W, b) pairs in PyTorch layout:
            W = (out_features, in_features), b = (out_features, 1), float32.
    """
    if sub_b % 128 != 0:
        raise ValueError("sub_b must be a multiple of 128 (lane width)")

    B, in_dim = x.shape
    hidden = params[0][0].shape[0]
    out_dim = params[-1][0].shape[0]

    if compute_dtype is None:
        compute_dtype = _default_compute_dtype()
    act_itemsize = jnp.dtype(compute_dtype).itemsize

    # ---- batch tiling -------------------------------------------------------
    if B <= sub_b:
        # Tiny batch: one grid step, block dims == full array dims (any B legal).
        sub = B
        tb = B
    else:
        sub = sub_b
        # Largest tile <= requested, a multiple of `sub`, and small enough that
        # the grid has >= 2 steps so both v7x TensorCores get work.
        cap_two = sub * pl.cdiv(pl.cdiv(B, 2), sub)
        tb = max(sub, (min(tile_b, cap_two) // sub) * sub)
    grid_b = pl.cdiv(B, tb)
    n_sub = tb // sub

    # ---- inputs & specs -----------------------------------------------------
    x = x.astype(compute_dtype)
    flat_args = [x]
    in_specs = [pl.BlockSpec((tb, in_dim), lambda i: (i, 0))]
    for w, b in params:
        flat_args.append(w.astype(compute_dtype))   # weights resident in VMEM
        flat_args.append(b.astype(jnp.float32))     # biases stay f32
        # Constant index_map -> fetched once; single buffer is enough.
        in_specs.append(pl.BlockSpec(w.shape, lambda i: (0, 0),
                                     pipeline_mode=pl.Buffered(1)))
        in_specs.append(pl.BlockSpec(b.shape, lambda i: (0, 0),
                                     pipeline_mode=pl.Buffered(1)))

    # ---- VMEM footprint -> explicit (but not maxed-out) vmem limit ----------
    def _padded_bytes(rows, cols, itemsize):
        return (-(-rows // 8) * 8) * (-(-cols // 128) * 128) * itemsize

    vmem_bytes = 2 * _padded_bytes(tb, in_dim, act_itemsize)        # x tile, dbl-buffered
    vmem_bytes += 2 * _padded_bytes(out_dim, tb, 4)                 # y^T tile, dbl-buffered
    for w, b in params:
        vmem_bytes += _padded_bytes(w.shape[0], w.shape[1], act_itemsize)
        vmem_bytes += _padded_bytes(b.shape[0], b.shape[1], 4)
    vmem_bytes += 8 * _padded_bytes(hidden, sub, 4)                 # live activation temps
    vmem_limit = int(min(max(2 * vmem_bytes + (4 << 20), 16 << 20), 48 << 20))

    # ---- advisory cost estimate for the XLA scheduler ------------------------
    flops = 2 * B * (in_dim * hidden + 3 * hidden * hidden + hidden * out_dim)
    weight_bytes = sum(int(w.size) * act_itemsize + int(b.size) * 4 for w, b in params)
    bytes_accessed = B * in_dim * act_itemsize + B * out_dim * 4 + weight_bytes

    out_t = pl.pallas_call(
        functools.partial(_mlp_kernel, sub_b=sub, n_sub=n_sub),
        out_shape=jax.ShapeDtypeStruct((out_dim, B), jnp.float32),
        grid=(grid_b,),
        in_specs=in_specs,
        out_specs=pl.BlockSpec((out_dim, tb), lambda i: (0, i)),
        compiler_params=pltpu.CompilerParams(
            dimension_semantics=("parallel",),     # megacore split on v7x
            vmem_limit_bytes=vmem_limit),
        cost_estimate=pl.CostEstimate(flops=int(flops),
                                      transcendentals=0,
                                      bytes_accessed=int(bytes_accessed)),
    )(*flat_args)

    # Tiny (2, B) -> (B, 2) transpose in the wrapper (8 bytes/row).
    return out_t.T


def init_params(key, hidden_size):
    """Deterministic init mirroring PyTorch nn.Linear default
    (uniform +/- 1/sqrt(fan_in)); weights in PyTorch (out, in) layout,
    biases as (out, 1) columns."""
    dims = [(9, hidden_size),
            (hidden_size, hidden_size),
            (hidden_size, hidden_size),
            (hidden_size, hidden_size),
            (hidden_size, 2)]
    params = []
    for fan_in, fan_out in dims:
        key, kw, kb = jax.random.split(key, 3)
        bound = 1.0 / math.sqrt(fan_in)
        w = jax.random.uniform(kw, (fan_out, fan_in), jnp.float32, -bound, bound)
        b = jax.random.uniform(kb, (fan_out, 1), jnp.float32, -bound, bound)
        params.append((w, b))
    return params


def reference_forward(x, params):
    """Pure-JAX reference of the PyTorch forward."""
    (w1, b1), (w2, b2), (w3, b3), (w4, b4), (w5, b5) = params
    h = jax.nn.relu(x @ w1.T + b1.T)
    h = jax.nn.relu(h + (h @ w2.T + b2.T))
    h = jax.nn.relu(h + (h @ w3.T + b3.T))
    h = jax.nn.relu(h + (h @ w4.T + b4.T))
    return h @ w5.T + b5.T


if __name__ == "__main__":
    key = jax.random.PRNGKey(0)
    key, kx = jax.random.split(key)

    batch = 8
    hidden_size = 32

    x = jax.random.normal(kx, (batch, 9), jnp.float32)
    params = init_params(key, hidden_size)
    y_ref = reference_forward(x, params)

    # f32 path (tight tolerance vs reference); single grid step, single sub-chunk.
    y = jax.block_until_ready(mlp_forward(x, params, compute_dtype=jnp.float32))
    assert y.shape == (batch, 2), y.shape
    assert jnp.allclose(y, y_ref, atol=1e-4, rtol=1e-4), "f32 mismatch vs reference"

    # bf16 activation/weight path (HBM-traffic optimization for v6e/v7x),
    # f32 accumulation + f32 elementwise -> loose tolerance vs f32 reference.
    y_bf16 = jax.block_until_ready(
        mlp_forward(x, params, compute_dtype=jnp.bfloat16))
    assert y_bf16.shape == (batch, 2), y_bf16.shape
    assert jnp.allclose(y_bf16, y_ref, atol=1e-1, rtol=5e-2), "bf16 mismatch vs reference"

    # Multi-grid-step + ragged last block + multi-sub-chunk path
    # (B=600, sub=256 -> tile_b=512, grid=2, n_sub=2, last block 88/512 valid rows).
    key, kx2 = jax.random.split(key)
    x2 = jax.random.normal(kx2, (600, 9), jnp.float32)
    y2 = jax.block_until_ready(mlp_forward(x2, params, compute_dtype=jnp.float32))
    assert y2.shape == (600, 2), y2.shape
    assert jnp.allclose(y2, reference_forward(x2, params), atol=1e-4, rtol=1e-4), \
        "tiled/ragged-batch mismatch vs reference"

    # Per-generation default compute dtype (bf16 on v6e/v7x, f32 on v5e/older).
    y_def = jax.block_until_ready(mlp_forward(x, params))
    assert y_def.shape == (batch, 2), y_def.shape
    assert bool(jnp.all(jnp.isfinite(y_def))), "non-finite output on default-dtype path"

    print("KERNEL_OK")
</pallas_src>

<mosaic_0001>
module attributes {stable_mosaic.version = 11 : i64} {
  func.func @_mlp_kernel(%arg0: i32, %arg1: memref<8x9xf32, #tpu.memory_space<vmem>>, %arg2: memref<32x9xf32, #tpu.memory_space<vmem>>, %arg3: memref<32x1xf32, #tpu.memory_space<vmem>>, %arg4: memref<32x32xf32, #tpu.memory_space<vmem>>, %arg5: memref<32x1xf32, #tpu.memory_space<vmem>>, %arg6: memref<32x32xf32, #tpu.memory_space<vmem>>, %arg7: memref<32x1xf32, #tpu.memory_space<vmem>>, %arg8: memref<32x32xf32, #tpu.memory_space<vmem>>, %arg9: memref<32x1xf32, #tpu.memory_space<vmem>>, %arg10: memref<2x32xf32, #tpu.memory_space<vmem>>, %arg11: memref<2x1xf32, #tpu.memory_space<vmem>>, %arg12: memref<2x8xf32, #tpu.memory_space<vmem>>) attributes {dimension_semantics = [#tpu.dimension_semantics<parallel>], iteration_bounds = array<i64: 1>, scalar_prefetch = 0 : i64, scratch_operands = 0 : i64, tpu.core_type = #tpu.core_type<tc>, window_params = [{transform_indices = @transform_0, window_bounds = array<i64: 8, 9>}, {pipeline_mode = #tpu.pipeline_mode<synchronous>, transform_indices = @transform_1, window_bounds = array<i64: 32, 9>}, {pipeline_mode = #tpu.pipeline_mode<synchronous>, transform_indices = @transform_2, window_bounds = array<i64: 32, 1>}, {pipeline_mode = #tpu.pipeline_mode<synchronous>, transform_indices = @transform_3, window_bounds = array<i64: 32, 32>}, {pipeline_mode = #tpu.pipeline_mode<synchronous>, transform_indices = @transform_4, window_bounds = array<i64: 32, 1>}, {pipeline_mode = #tpu.pipeline_mode<synchronous>, transform_indices = @transform_5, window_bounds = array<i64: 32, 32>}, {pipeline_mode = #tpu.pipeline_mode<synchronous>, transform_indices = @transform_6, window_bounds = array<i64: 32, 1>}, {pipeline_mode = #tpu.pipeline_mode<synchronous>, transform_indices = @transform_7, window_bounds = array<i64: 32, 32>}, {pipeline_mode = #tpu.pipeline_mode<synchronous>, transform_indices = @transform_8, window_bounds = array<i64: 32, 1>}, {pipeline_mode = #tpu.pipeline_mode<synchronous>, transform_indices = @transform_9, window_bounds = array<i64: 2, 32>}, {pipeline_mode = #tpu.pipeline_mode<synchronous>, transform_indices = @transform_10, window_bounds = array<i64: 2, 1>}, {transform_indices = @transform_11, window_bounds = array<i64: 2, 8>}]} {
    %c0 = arith.constant 0 : index
    %c0_0 = arith.constant 0 : index
    %0 = vector.load %arg2[%c0, %c0_0] : memref<32x9xf32, #tpu.memory_space<vmem>>, vector<32x9xf32>
    %c0_1 = arith.constant 0 : index
    %c0_2 = arith.constant 0 : index
    %1 = vector.load %arg3[%c0_1, %c0_2] : memref<32x1xf32, #tpu.memory_space<vmem>>, vector<32x1xf32>
    %c0_3 = arith.constant 0 : index
    %c0_4 = arith.constant 0 : index
    %2 = vector.load %arg4[%c0_3, %c0_4] : memref<32x32xf32, #tpu.memory_space<vmem>>, vector<32x32xf32>
    %c0_5 = arith.constant 0 : index
    %c0_6 = arith.constant 0 : index
    %3 = vector.load %arg5[%c0_5, %c0_6] : memref<32x1xf32, #tpu.memory_space<vmem>>, vector<32x1xf32>
    %c0_7 = arith.constant 0 : index
    %c0_8 = arith.constant 0 : index
    %4 = vector.load %arg6[%c0_7, %c0_8] : memref<32x32xf32, #tpu.memory_space<vmem>>, vector<32x32xf32>
    %c0_9 = arith.constant 0 : index
    %c0_10 = arith.constant 0 : index
    %5 = vector.load %arg7[%c0_9, %c0_10] : memref<32x1xf32, #tpu.memory_space<vmem>>, vector<32x1xf32>
    %c0_11 = arith.constant 0 : index
    %c0_12 = arith.constant 0 : index
    %6 = vector.load %arg8[%c0_11, %c0_12] : memref<32x32xf32, #tpu.memory_space<vmem>>, vector<32x32xf32>
    %c0_13 = arith.constant 0 : index
    %c0_14 = arith.constant 0 : index
    %7 = vector.load %arg9[%c0_13, %c0_14] : memref<32x1xf32, #tpu.memory_space<vmem>>, vector<32x1xf32>
    %c0_15 = arith.constant 0 : index
    %c0_16 = arith.constant 0 : index
    %8 = vector.load %arg10[%c0_15, %c0_16] : memref<2x32xf32, #tpu.memory_space<vmem>>, vector<2x32xf32>
    %c0_17 = arith.constant 0 : index
    %c0_18 = arith.constant 0 : index
    %9 = vector.load %arg11[%c0_17, %c0_18] : memref<2x1xf32, #tpu.memory_space<vmem>>, vector<2x1xf32>
    %c0_19 = arith.constant 0 : index
    %c0_20 = arith.constant 0 : index
    %10 = vector.load %arg1[%c0_19, %c0_20] : memref<8x9xf32, #tpu.memory_space<vmem>>, vector<8x9xf32>
    %cst = arith.constant dense<0.000000e+00> : vector<32x8xf32>
    %11 = tpu.matmul %0, %10, %cst {dimension_numbers = #tpu.dot_dimension_numbers<[1], [1], [0], [0], [0, 0, 1, 0], [], []>} : vector<32x9xf32>, vector<8x9xf32>, vector<32x8xf32> -> vector<32x8xf32>
    %12 = vector.broadcast %1 : vector<32x1xf32> to vector<32x8xf32>
    %13 = arith.addf %11, %12 : vector<32x8xf32>
    %cst_21 = arith.constant 0.000000e+00 : f32
    %14 = vector.broadcast %cst_21 : f32 to vector<32x8xf32>
    %15 = arith.maximumf %13, %14 : vector<32x8xf32>
    %cst_22 = arith.constant dense<0.000000e+00> : vector<32x8xf32>
    %16 = tpu.matmul %2, %15, %cst_22 {dimension_numbers = #tpu.dot_dimension_numbers<[1], [0], [0], [1], [0, 0, 1, 1], [], []>} : vector<32x32xf32>, vector<32x8xf32>, vector<32x8xf32> -> vector<32x8xf32>
    %17 = vector.broadcast %3 : vector<32x1xf32> to vector<32x8xf32>
    %18 = arith.addf %16, %17 : vector<32x8xf32>
    %19 = arith.addf %15, %18 : vector<32x8xf32>
    %cst_23 = arith.constant 0.000000e+00 : f32
    %20 = vector.broadcast %cst_23 : f32 to vector<32x8xf32>
    %21 = arith.maximumf %19, %20 : vector<32x8xf32>
    %cst_24 = arith.constant dense<0.000000e+00> : vector<32x8xf32>
    %22 = tpu.matmul %4, %21, %cst_24 {dimension_numbers = #tpu.dot_dimension_numbers<[1], [0], [0], [1], [0, 0, 1, 1], [], []>} : vector<32x32xf32>, vector<32x8xf32>, vector<32x8xf32> -> vector<32x8xf32>
    %23 = vector.broadcast %5 : vector<32x1xf32> to vector<32x8xf32>
    %24 = arith.addf %22, %23 : vector<32x8xf32>
    %25 = arith.addf %21, %24 : vector<32x8xf32>
    %cst_25 = arith.constant 0.000000e+00 : f32
    %26 = vector.broadcast %cst_25 : f32 to vector<32x8xf32>
    %27 = arith.maximumf %25, %26 : vector<32x8xf32>
    %cst_26 = arith.constant dense<0.000000e+00> : vector<32x8xf32>
    %28 = tpu.matmul %6, %27, %cst_26 {dimension_numbers = #tpu.dot_dimension_numbers<[1], [0], [0], [1], [0, 0, 1, 1], [], []>} : vector<32x32xf32>, vector<32x8xf32>, vector<32x8xf32> -> vector<32x8xf32>
    %29 = vector.broadcast %7 : vector<32x1xf32> to vector<32x8xf32>
    %30 = arith.addf %28, %29 : vector<32x8xf32>
    %31 = arith.addf %27, %30 : vector<32x8xf32>
    %cst_27 = arith.constant 0.000000e+00 : f32
    %32 = vector.broadcast %cst_27 : f32 to vector<32x8xf32>
    %33 = arith.maximumf %31, %32 : vector<32x8xf32>
    %cst_28 = arith.constant dense<0.000000e+00> : vector<2x8xf32>
    %34 = tpu.matmul %8, %33, %cst_28 {dimension_numbers = #tpu.dot_dimension_numbers<[1], [0], [0], [1], [0, 0, 1, 1], [], []>} : vector<2x32xf32>, vector<32x8xf32>, vector<2x8xf32> -> vector<2x8xf32>
    %35 = vector.broadcast %9 : vector<2x1xf32> to vector<2x8xf32>
    %36 = arith.addf %34, %35 : vector<2x8xf32>
    %c0_29 = arith.constant 0 : index
    %c0_30 = arith.constant 0 : index
    %37 = vector.load %arg12[%c0_29, %c0_30] : memref<2x8xf32, #tpu.memory_space<vmem>>, vector<2x8xf32>
    tpu.vector_store %arg12[%c0_29, %c0_30], %36 {strides = array<i32>} : memref<2x8xf32, #tpu.memory_space<vmem>>, vector<2x8xf32>,
    return
  }
  func.func @transform_0(%arg0: i32) -> (i32, i32) {
    %c0_i32 = arith.constant 0 : i32
    %c0_i32_0 = arith.constant 0 : i32
    return %arg0, %c0_i32 : i32, i32
  }
  func.func @transform_1(%arg0: i32) -> (i32, i32) {
    %c0_i32 = arith.constant 0 : i32
    %c0_i32_0 = arith.constant 0 : i32
    %c0_i32_1 = arith.constant 0 : i32
    return %c0_i32, %c0_i32_0 : i32, i32
  }
  func.func @transform_2(%arg0: i32) -> (i32, i32) {
    %c0_i32 = arith.constant 0 : i32
    %c0_i32_0 = arith.constant 0 : i32
    %c0_i32_1 = arith.constant 0 : i32
    return %c0_i32, %c0_i32_0 : i32, i32
  }
  func.func @transform_3(%arg0: i32) -> (i32, i32) {
    %c0_i32 = arith.constant 0 : i32
    %c0_i32_0 = arith.constant 0 : i32
    %c0_i32_1 = arith.constant 0 : i32
    return %c0_i32, %c0_i32_0 : i32, i32
  }
  func.func @transform_4(%arg0: i32) -> (i32, i32) {
    %c0_i32 = arith.constant 0 : i32
    %c0_i32_0 = arith.constant 0 : i32
    %c0_i32_1 = arith.constant 0 : i32
    return %c0_i32, %c0_i32_0 : i32, i32
  }
  func.func @transform_5(%arg0: i32) -> (i32, i32) {
    %c0_i32 = arith.constant 0 : i32
    %c0_i32_0 = arith.constant 0 : i32
    %c0_i32_1 = arith.constant 0 : i32
    return %c0_i32, %c0_i32_0 : i32, i32
  }
  func.func @transform_6(%arg0: i32) -> (i32, i32) {
    %c0_i32 = arith.constant 0 : i32
    %c0_i32_0 = arith.constant 0 : i32
    %c0_i32_1 = arith.constant 0 : i32
    return %c0_i32, %c0_i32_0 : i32, i32
  }
  func.func @transform_7(%arg0: i32) -> (i32, i32) {
    %c0_i32 = arith.constant 0 : i32
    %c0_i32_0 = arith.constant 0 : i32
    %c0_i32_1 = arith.constant 0 : i32
    return %c0_i32, %c0_i32_0 : i32, i32
  }
  func.func @transform_8(%arg0: i32) -> (i32, i32) {
    %c0_i32 = arith.constant 0 : i32
    %c0_i32_0 = arith.constant 0 : i32
    %c0_i32_1 = arith.constant 0 : i32
    return %c0_i32, %c0_i32_0 : i32, i32
  }
  func.func @transform_9(%arg0: i32) -> (i32, i32) {
    %c0_i32 = arith.constant 0 : i32
    %c0_i32_0 = arith.constant 0 : i32
    %c0_i32_1 = arith.constant 0 : i32
    return %c0_i32, %c0_i32_0 : i32, i32
  }
  func.func @transform_10(%arg0: i32) -> (i32, i32) {
    %c0_i32 = arith.constant 0 : i32
    %c0_i32_0 = arith.constant 0 : i32
    %c0_i32_1 = arith.constant 0 : i32
    return %c0_i32, %c0_i32_0 : i32, i32
  }
  func.func @transform_11(%arg0: i32) -> (i32, i32) {
    %c0_i32 = arith.constant 0 : i32
    %c0_i32_0 = arith.constant 0 : i32
    return %c0_i32, %arg0 : i32, i32
  }
}

</mosaic_0001>

<llo_original>
// kernel: tpu_custom_call.1
$region0: #{tpu_custom_call.1}
  #allocation0 [shape = 'u32[]', space=smem, size = 0x4, offset = 0x4, fixed_abs, tag = 'smem constant byte address 0x4 - core index']
  #allocation1 [shape = 'u32[72,128]{1,0:T(1,128)}', space=vmem, size = 0x9000, scoped, tag = 'internal scratch']
  %s0 = inlined_call_operand.vmem [shape: f32[8,9], index: 0, kind: input, shape index: {}]
  %s1 = inlined_call_operand.vmem [shape: f32[32,9], index: 1, kind: input, shape index: {}]
  %s2 = inlined_call_operand.vmem [shape: f32[32,1], index: 2, kind: input, shape index: {}]
  %s3 = inlined_call_operand.vmem [shape: f32[32,32], index: 3, kind: input, shape index: {}]
  %s4 = inlined_call_operand.vmem [shape: f32[32,1], index: 4, kind: input, shape index: {}]
  %s5 = inlined_call_operand.vmem [shape: f32[32,32], index: 5, kind: input, shape index: {}]
  %s6 = inlined_call_operand.vmem [shape: f32[32,1], index: 6, kind: input, shape index: {}]
  %s7 = inlined_call_operand.vmem [shape: f32[32,32], index: 7, kind: input, shape index: {}]
  %s8 = inlined_call_operand.vmem [shape: f32[32,1], index: 8, kind: input, shape index: {}]
  %s9 = inlined_call_operand.vmem [shape: f32[2,32], index: 9, kind: input, shape index: {}]
  %s10 = inlined_call_operand.vmem [shape: f32[2,1], index: 10, kind: input, shape index: {}]
  %s11 = inlined_call_operand.hbm [shape: f32[2,8], index: 11, kind: output, shape index: {}]
  %s12 = sld [smem:[#allocation0]]
  $region54: #{tpu_custom_call.1} parent=0
    _
  %s14 = ssub.s32 1, %s12
  %s15 = scalar_select 0, %s14, %s12
  $region1: #{tpu_custom_call.1} parent=0
    #allocation2 [shape = 'u8[1024]{0}', space=vmem, size = 0x400, scoped, tag = 'output window, operand 0, single buffered']
    #allocation3 [shape = 's32[1]{0}', space=sflag, size = 0x4, scoped, tag = 'scoped memory for tpu_custom_call.1']
    %16 = vsyncpa [#allocation3], 0
    // Predicated region
    $region2: #{tpu_custom_call.1} parent=1 // pred_check
      _
    $region3: #{tpu_custom_call.1} parent=1 // pred_check_branch
      %18 = sbr.rel (0) target = $region5
    $region4: #{tpu_custom_call.1} parent=1 // pred_region
      _
    $region5: #{tpu_custom_call.1} parent=1 // pred_fallthru
      _
    // Predicated region
    $region6: #{tpu_custom_call.1} parent=1 // pred_check
      _
    $region7: #{tpu_custom_call.1} parent=1 // pred_check_branch
      %20 = sbr.rel (0) target = $region9
    $region8: #{tpu_custom_call.1} parent=1 // pred_region
      _
    $region9: #{tpu_custom_call.1} parent=1 // pred_fallthru
      _
    // Predicated region
    $region10: #{tpu_custom_call.1} parent=1 // pred_check
      _
    $region11: #{tpu_custom_call.1} parent=1 // pred_check_branch
      %22 = sbr.rel (0) target = $region13
    $region12: #{tpu_custom_call.1} parent=1 // pred_region
      _
    $region13: #{tpu_custom_call.1} parent=1 // pred_fallthru
      _
    // Predicated region
    $region14: #{tpu_custom_call.1} parent=1 // pred_check
      _
    $region15: #{tpu_custom_call.1} parent=1 // pred_check_branch
      %24 = sbr.rel (0) target = $region17
    $region16: #{tpu_custom_call.1} parent=1 // pred_region
      _
    $region17: #{tpu_custom_call.1} parent=1 // pred_fallthru
      _
    // Predicated region
    $region18: #{tpu_custom_call.1} parent=1 // pred_check
      _
    $region19: #{tpu_custom_call.1} parent=1 // pred_check_branch
      %26 = sbr.rel (0) target = $region21
    $region20: #{tpu_custom_call.1} parent=1 // pred_region
      _
    $region21: #{tpu_custom_call.1} parent=1 // pred_fallthru
      _
    // Predicated region
    $region22: #{tpu_custom_call.1} parent=1 // pred_check
      _
    $region23: #{tpu_custom_call.1} parent=1 // pred_check_branch
      %28 = sbr.rel (0) target = $region25
    $region24: #{tpu_custom_call.1} parent=1 // pred_region
      _
    $region25: #{tpu_custom_call.1} parent=1 // pred_fallthru
      _
    // Predicated region
    $region26: #{tpu_custom_call.1} parent=1 // pred_check
      _
    $region27: #{tpu_custom_call.1} parent=1 // pred_check_branch
      %30 = sbr.rel (0) target = $region29
    $region28: #{tpu_custom_call.1} parent=1 // pred_region
      _
    $region29: #{tpu_custom_call.1} parent=1 // pred_fallthru
      _
    // Predicated region
    $region30: #{tpu_custom_call.1} parent=1 // pred_check
      _
    $region31: #{tpu_custom_call.1} parent=1 // pred_check_branch
      %32 = sbr.rel (0) target = $region33
    $region32: #{tpu_custom_call.1} parent=1 // pred_region
      _
    $region33: #{tpu_custom_call.1} parent=1 // pred_fallthru
      _
    // Predicated region
    $region34: #{tpu_custom_call.1} parent=1 // pred_check
      _
    $region35: #{tpu_custom_call.1} parent=1 // pred_check_branch
      %34 = sbr.rel (0) target = $region37
    $region36: #{tpu_custom_call.1} parent=1 // pred_region
      _
    $region37: #{tpu_custom_call.1} parent=1 // pred_fallthru
      _
    // Predicated region
    $region38: #{tpu_custom_call.1} parent=1 // pred_check
      _
    $region39: #{tpu_custom_call.1} parent=1 // pred_check_branch
      %36 = sbr.rel (0) target = $region41
    $region40: #{tpu_custom_call.1} parent=1 // pred_region
      _
    $region41: #{tpu_custom_call.1} parent=1 // pred_fallthru
      _
    // Predicated region
    $region42: #{tpu_custom_call.1} parent=1 // pred_check
      _
    $region43: #{tpu_custom_call.1} parent=1 // pred_check_branch
      %38 = sbr.rel (0) target = $region45
    $region44: #{tpu_custom_call.1} parent=1 // pred_region
      _
    $region45: #{tpu_custom_call.1} parent=1 // pred_fallthru
      _
    %v39 = vld [vmem:[%s1] sm:$0xff]
    %v40 = vld [vmem:[%s1 + $0x8] sm:$0xff]
    %v41 = vld [vmem:[%s1 + $0x10] sm:$0xff]
    %v42 = vld [vmem:[%s1 + $0x18] sm:$0xff]
    %v43 = vld [vmem:[%s2] sm:$0xff]
    %v44 = vld [vmem:[%s2 + $0x8] sm:$0xff]
    %v45 = vld [vmem:[%s2 + $0x10] sm:$0xff]
    %v46 = vld [vmem:[%s2 + $0x18] sm:$0xff]
    %v47 = vld [vmem:[%s3] sm:$0xff]
    %v48 = vld [vmem:[%s3 + $0x8] sm:$0xff]
    %v49 = vld [vmem:[%s3 + $0x10] sm:$0xff]
    %v50 = vld [vmem:[%s3 + $0x18] sm:$0xff]
    %v51 = vld [vmem:[%s4] sm:$0xff]
    %v52 = vld [vmem:[%s4 + $0x8] sm:$0xff]
    %v53 = vld [vmem:[%s4 + $0x10] sm:$0xff]
    %v54 = vld [vmem:[%s4 + $0x18] sm:$0xff]
    %v55 = vld [vmem:[%s5] sm:$0xff]
    %v56 = vld [vmem:[%s5 + $0x8] sm:$0xff]
    %v57 = vld [vmem:[%s5 + $0x10] sm:$0xff]
    %v58 = vld [vmem:[%s5 + $0x18] sm:$0xff]
    %v59 = vld [vmem:[%s6] sm:$0xff]
    %v60 = vld [vmem:[%s6 + $0x8] sm:$0xff]
    %v61 = vld [vmem:[%s6 + $0x10] sm:$0xff]
    %v62 = vld [vmem:[%s6 + $0x18] sm:$0xff]
    %v63 = vld [vmem:[%s7] sm:$0xff]
    %v64 = vld [vmem:[%s7 + $0x8] sm:$0xff]
    %v65 = vld [vmem:[%s7 + $0x10] sm:$0xff]
    %v66 = vld [vmem:[%s7 + $0x18] sm:$0xff]
    %v67 = vld [vmem:[%s8] sm:$0xff]
    %v68 = vld [vmem:[%s8 + $0x8] sm:$0xff]
    %v69 = vld [vmem:[%s8 + $0x10] sm:$0xff]
    %v70 = vld [vmem:[%s8 + $0x18] sm:$0xff]
    %v71 = vld [vmem:[%s9] sm:$0x3]
    %v72 = vld [vmem:[%s10] sm:$0x3]
    %v73 = vld [vmem:[%s0] sm:$0xff]
    %75 = vset.pattern.permute.xlu0 0
    %76 = vperm.xlu0 %75, %v43
    %v77 = vpop.permute.xlu0 %76
    %80 = vset.pattern.permute.xlu0 0
    %81 = vperm.xlu0 %80, %v44
    %v82 = vpop.permute.xlu0 %81
    %85 = vset.pattern.permute.xlu0 0
    %86 = vperm.xlu0 %85, %v45
    %v87 = vpop.permute.xlu0 %86
    %90 = vset.pattern.permute.xlu0 0
    %91 = vperm.xlu0 %90, %v46
    %v92 = vpop.permute.xlu0 %91
    %vm94 = vcmask 72704
    %v96 = vsel %vm94, %v39, 0
    %v99 = vsel %vm94, %v40, 0
    %v102 = vsel %vm94, %v41, 0
    %v105 = vsel %vm94, %v42, 0
    %v108 = vsel %vm94, %v73, 0
    %110 = vmatpush.xpose.msra.mxu0 0.0
    %111 = vmatpush.xpose.msra.mxu0 0.0
    %112 = vmatpush.xpose.msra.mxu0 0.0
    %113 = vmatpush.xpose.msra.mxu0 0.0
    %114 = vmatpush.xpose.msra.mxu0 0.0
    %115 = vmatpush.xpose.msra.mxu0 0.0
    %116 = vmatpush.xpose.msra.mxu0 0.0
    %117 = vmatpush.xpose.msra.mxu0 0.0
    %118 = vmatpush.xpose.msra.mxu0 0.0
    %119 = vmatpush.xpose.msra.mxu0 0.0
    %120 = vmatpush.xpose.msra.mxu0 0.0
    %121 = vmatpush.xpose.msra.mxu0 0.0
    %122 = vmatpush.xpose.msra.mxu0 0.0
    %123 = vmatpush.xpose.msra.mxu0 0.0
    %124 = vmatpush.xpose.msra.mxu0 0.0
    %125 = vmatpush.xpose.msra.mxu0 %v108
    %126 = vmatmul.f32.gmra.mxu0 %v96
    %v127 = vpop.f32.mrf.mxu0
    %v128 = vadd.f32 %v77, %v127
    %129 = vmatmul.f32.gmra.mxu0 %v99
    %v130 = vpop.f32.mrf.mxu0
    %v131 = vadd.f32 %v82, %v130
    %132 = vmatmul.f32.gmra.mxu0 %v102
    %v133 = vpop.f32.mrf.mxu0
    %v134 = vadd.f32 %v87, %v133
    %135 = vmatmul.f32.gmra.mxu0 %v105
    %v136 = vpop.f32.mrf.mxu0
    %v137 = vadd.f32 %v92, %v136
    %138 = vdwg.mxu0
    %v139 = vmax.f32 %v128, 0.0
    %v140 = vmax.f32 %v131, 0.0
    %v141 = vmax.f32 %v134, 0.0
    %v142 = vmax.f32 %v137, 0.0
    %144 = vset.pattern.permute.xlu0 0
    %145 = vperm.xlu0 %144, %v51
    %v146 = vpop.permute.xlu0 %145
    %149 = vset.pattern.permute.xlu0 0
    %150 = vperm.xlu0 %149, %v52
    %v151 = vpop.permute.xlu0 %150
    %154 = vset.pattern.permute.xlu0 0
    %155 = vperm.xlu0 %154, %v53
    %v156 = vpop.permute.xlu0 %155
    %159 = vset.pattern.permute.xlu0 0
    %160 = vperm.xlu0 %159, %v54
    %v161 = vpop.permute.xlu0 %160
    %vm163 = vcmask 261120
    %v165 = vsel %vm163, %v47, 0
    %v168 = vsel %vm163, %v48, 0
    %v171 = vsel %vm163, %v49, 0
    %v174 = vsel %vm163, %v50, 0
    %176 = vmatpush.msra.mxu0 0.0
    %177 = vmatpush.msra.mxu0 0.0
    %178 = vmatpush.msra.mxu0 0.0
    %179 = vmatpush.msra.mxu0 0.0
    %180 = vmatpush.msra.mxu0 0.0
    %181 = vmatpush.msra.mxu0 0.0
    %182 = vmatpush.msra.mxu0 0.0
    %183 = vmatpush.msra.mxu0 0.0
    %184 = vmatpush.msra.mxu0 0.0
    %185 = vmatpush.msra.mxu0 0.0
    %186 = vmatpush.msra.mxu0 0.0
    %187 = vmatpush.msra.mxu0 0.0
    %188 = vmatpush.msra.mxu0 %v142
    %189 = vmatpush.msra.mxu0 %v141
    %190 = vmatpush.msra.mxu0 %v140
    %191 = vmatpush.msra.mxu0 %v139
    %192 = vmatmul.f32.gmra.mxu0 %v165
    %v193 = vpop.f32.mrf.mxu0
    %v194 = vadd.f32 %v146, %v193
    %195 = vmatmul.f32.gmra.mxu0 %v168
    %v196 = vpop.f32.mrf.mxu0
    %v197 = vadd.f32 %v151, %v196
    %198 = vmatmul.f32.gmra.mxu0 %v171
    %v199 = vpop.f32.mrf.mxu0
    %v200 = vadd.f32 %v156, %v199
    %201 = vmatmul.f32.gmra.mxu0 %v174
    %v202 = vpop.f32.mrf.mxu0
    %v203 = vadd.f32 %v161, %v202
    %204 = vdwg.mxu0
    %v205 = vadd.f32 %v139, %v194
    %v206 = vadd.f32 %v140, %v197
    %v207 = vadd.f32 %v141, %v200
    %v208 = vadd.f32 %v142, %v203
    %v209 = vmax.f32 %v205, 0.0
    %v210 = vmax.f32 %v206, 0.0
    %v211 = vmax.f32 %v207, 0.0
    %v212 = vmax.f32 %v208, 0.0
    %214 = vset.pattern.permute.xlu0 0
    %215 = vperm.xlu0 %214, %v59
    %v216 = vpop.permute.xlu0 %215
    %219 = vset.pattern.permute.xlu0 0
    %220 = vperm.xlu0 %219, %v60
    %v221 = vpop.permute.xlu0 %220
    %224 = vset.pattern.permute.xlu0 0
    %225 = vperm.xlu0 %224, %v61
    %v226 = vpop.permute.xlu0 %225
    %229 = vset.pattern.permute.xlu0 0
    %230 = vperm.xlu0 %229, %v62
    %v231 = vpop.permute.xlu0 %230
    %v234 = vsel %vm163, %v55, 0
    %v237 = vsel %vm163, %v56, 0
    %v240 = vsel %vm163, %v57, 0
    %v243 = vsel %vm163, %v58, 0
    %245 = vmatpush.msra.mxu0 0.0
    %246 = vmatpush.msra.mxu0 0.0
    %247 = vmatpush.msra.mxu0 0.0
    %248 = vmatpush.msra.mxu0 0.0
    %249 = vmatpush.msra.mxu0 0.0
    %250 = vmatpush.msra.mxu0 0.0
    %251 = vmatpush.msra.mxu0 0.0
    %252 = vmatpush.msra.mxu0 0.0
    %253 = vmatpush.msra.mxu0 0.0
    %254 = vmatpush.msra.mxu0 0.0
    %255 = vmatpush.msra.mxu0 0.0
    %256 = vmatpush.msra.mxu0 0.0
    %257 = vmatpush.msra.mxu0 %v212
    %258 = vmatpush.msra.mxu0 %v211
    %259 = vmatpush.msra.mxu0 %v210
    %260 = vmatpush.msra.mxu0 %v209
    %261 = vmatmul.f32.gmra.mxu0 %v234
    %v262 = vpop.f32.mrf.mxu0
    %v263 = vadd.f32 %v216, %v262
    %264 = vmatmul.f32.gmra.mxu0 %v237
    %v265 = vpop.f32.mrf.mxu0
    %v266 = vadd.f32 %v221, %v265
    %267 = vmatmul.f32.gmra.mxu0 %v240
    %v268 = vpop.f32.mrf.mxu0
    %v269 = vadd.f32 %v226, %v268
    %270 = vmatmul.f32.gmra.mxu0 %v243
    %v271 = vpop.f32.mrf.mxu0
    %v272 = vadd.f32 %v231, %v271
    %273 = vdwg.mxu0
    %v274 = vadd.f32 %v209, %v263
    %v275 = vadd.f32 %v210, %v266
    %v276 = vadd.f32 %v211, %v269
    %v277 = vadd.f32 %v212, %v272
    %v278 = vmax.f32 %v274, 0.0
    %v279 = vmax.f32 %v275, 0.0
    %v280 = vmax.f32 %v276, 0.0
    %v281 = vmax.f32 %v277, 0.0
    %283 = vset.pattern.permute.xlu0 0
    %284 = vperm.xlu0 %283, %v67
    %v285 = vpop.permute.xlu0 %284
    %288 = vset.pattern.permute.xlu0 0
    %289 = vperm.xlu0 %288, %v68
    %v290 = vpop.permute.xlu0 %289
    %293 = vset.pattern.permute.xlu0 0
    %294 = vperm.xlu0 %293, %v69
    %v295 = vpop.permute.xlu0 %294
    %298 = vset.pattern.permute.xlu0 0
    %299 = vperm.xlu0 %298, %v70
    %v300 = vpop.permute.xlu0 %299
    %v303 = vsel %vm163, %v63, 0
    %v306 = vsel %vm163, %v64, 0
    %v309 = vsel %vm163, %v65, 0
    %v312 = vsel %vm163, %v66, 0
    %314 = vmatpush.msra.mxu0 0.0
    %315 = vmatpush.msra.mxu0 0.0
    %316 = vmatpush.msra.mxu0 0.0
    %317 = vmatpush.msra.mxu0 0.0
    %318 = vmatpush.msra.mxu0 0.0
    %319 = vmatpush.msra.mxu0 0.0
    %320 = vmatpush.msra.mxu0 0.0
    %321 = vmatpush.msra.mxu0 0.0
    %322 = vmatpush.msra.mxu0 0.0
    %323 = vmatpush.msra.mxu0 0.0
    %324 = vmatpush.msra.mxu0 0.0
    %325 = vmatpush.msra.mxu0 0.0
    %326 = vmatpush.msra.mxu0 %v281
    %327 = vmatpush.msra.mxu0 %v280
    %328 = vmatpush.msra.mxu0 %v279
    %329 = vmatpush.msra.mxu0 %v278
    %330 = vmatmul.f32.gmra.mxu0 %v303
    %v331 = vpop.f32.mrf.mxu0
    %v332 = vadd.f32 %v285, %v331
    %333 = vmatmul.f32.gmra.mxu0 %v306
    %v334 = vpop.f32.mrf.mxu0
    %v335 = vadd.f32 %v290, %v334
    %336 = vmatmul.f32.gmra.mxu0 %v309
    %v337 = vpop.f32.mrf.mxu0
    %v338 = vadd.f32 %v295, %v337
    %339 = vmatmul.f32.gmra.mxu0 %v312
    %v340 = vpop.f32.mrf.mxu0
    %v341 = vadd.f32 %v300, %v340
    %342 = vdwg.mxu0
    %v343 = vadd.f32 %v278, %v332
    %v344 = vadd.f32 %v279, %v335
    %v345 = vadd.f32 %v280, %v338
    %v346 = vadd.f32 %v281, %v341
    %v347 = vmax.f32 %v343, 0.0
    %v348 = vmax.f32 %v344, 0.0
    %v349 = vmax.f32 %v345, 0.0
    %v350 = vmax.f32 %v346, 0.0
    %352 = vset.pattern.permute.xlu0 0
    %353 = vperm.xlu0 %352, %v72
    %v354 = vpop.permute.xlu0 %353
    %v357 = vsel %vm163, %v71, 0
    %359 = vmatpush.msra.mxu0 0.0
    %360 = vmatpush.msra.mxu0 0.0
    %361 = vmatpush.msra.mxu0 0.0
    %362 = vmatpush.msra.mxu0 0.0
    %363 = vmatpush.msra.mxu0 0.0
    %364 = vmatpush.msra.mxu0 0.0
    %365 = vmatpush.msra.mxu0 0.0
    %366 = vmatpush.msra.mxu0 0.0
    %367 = vmatpush.msra.mxu0 0.0
    %368 = vmatpush.msra.mxu0 0.0
    %369 = vmatpush.msra.mxu0 0.0
    %370 = vmatpush.msra.mxu0 0.0
    %371 = vmatpush.msra.mxu0 %v350
    %372 = vmatpush.msra.mxu0 %v349
    %373 = vmatpush.msra.mxu0 %v348
    %374 = vmatpush.msra.mxu0 %v347
    %375 = vmatmul.f32.gmra.mxu0 %v357
    %v376 = vpop.f32.mrf.mxu0
    %v377 = vadd.f32 %v354, %v376
    %378 = vdwg.mxu0
    %vm379 = vcmask 58368
    %380 = vst.msk [vmem:[#allocation2] sm:$0x3] %vm379, %v377
    // Predicated region
    $region46: #{tpu_custom_call.1} parent=1 // pred_check
      _
    $region47: #{tpu_custom_call.1} parent=1 // pred_check_branch
      %382 = sbr.rel (0) target = $region49
    $region48: #{tpu_custom_call.1} parent=1 // pred_region
      %384 = vsyncadd [#allocation3], 0
      %s386 = sshll.u32 [#allocation2], 4
      %s387 = int_to_ptr.vmem [resolvable:$true] %s386
      %s388 = sshll.u32 %s11, 4
      %s389 = int_to_ptr.hbm [resolvable:$true] %s388
      %391 = dma.vmem_to_hbm [thread:$0]  %s387, 32, %s389, [#allocation3]
    $region49: #{tpu_custom_call.1} parent=1 // pred_fallthru
      _
    // Predicated region
    $region50: #{tpu_custom_call.1} parent=1 // pred_check
      _
    $region51: #{tpu_custom_call.1} parent=1 // pred_check_branch
      %393 = sbr.rel (0) target = $region53
    $region52: #{tpu_custom_call.1} parent=1 // pred_region
      %395 = dma.done [#allocation3], 32
    $region53: #{tpu_custom_call.1} parent=1 // pred_fallthru
      _
    %396 = vsyncpa [#allocation3], 1

</llo_original>
